<compile_context>
chip_gen: v6e
topology: v6e:2x2x1
jax: 0.10.0
libtpu: 0.0.40
codegen_flags: <defaults>
</compile_context>

<pallas_src>
import functools
from typing import List, Sequence, Tuple

import jax
import jax.numpy as jnp
from jax.experimental import pallas as pl
from jax.experimental.pallas import tpu as pltpu


# ---------------------------------------------------------------------------
# Pallas kernels (one grid step == one diagonal block)
# ---------------------------------------------------------------------------
def _block_matmul_kernel(x_ref, w_ref, o_ref):
    # x_ref: (1, N, k)  batch on sublanes, per-block in_features on lanes
    # w_ref: (1, k, m)  block weight, stored pre-transposed (W_b.T)
    # o_ref: (1, N, m)  per-block out_features on lanes (lane-dense stores)
    o_ref[0] = jnp.dot(
        x_ref[0], w_ref[0], preferred_element_type=jnp.float32
    ).astype(o_ref.dtype)


def _block_matmul_bias_kernel(x_ref, w_ref, b_ref, o_ref):
    acc = jnp.dot(x_ref[0], w_ref[0], preferred_element_type=jnp.float32)
    acc = acc + b_ref[0].astype(jnp.float32)  # (1, m) broadcasts over batch rows
    o_ref[0] = acc.astype(o_ref.dtype)


# ---------------------------------------------------------------------------
# Wrappers
# ---------------------------------------------------------------------------
def block_diag(blocks: Sequence[jax.Array]) -> jax.Array:
    """JAX equivalent of torch.block_diag for a list of 2-D blocks (reference)."""
    total_r = sum(b.shape[0] for b in blocks)
    total_c = sum(b.shape[1] for b in blocks)
    out = jnp.zeros((total_r, total_c), dtype=blocks[0].dtype)
    r = c = 0
    for b in blocks:
        out = out.at[r : r + b.shape[0], c : c + b.shape[1]].set(b)
        r += b.shape[0]
        c += b.shape[1]
    return out


@functools.partial(jax.jit, static_argnames=("has_bias",))
def block_linear_forward(w_kt: jax.Array,
                         x: jax.Array,
                         bias: jax.Array | None = None,
                         *,
                         has_bias: bool = False) -> jax.Array:
    """out = block_diag(W_1..W_B) @ x (+ bias) for equal-shaped blocks.

    w_kt : (n_blocks, k, m)  per-block weights, stored transposed (W_b.T)
    x    : (n_blocks * k, batch)
    out  : (n_blocks * m, batch)
    """
    n_blocks, k, m = w_kt.shape
    K, N = x.shape
    assert K == n_blocks * k, f"shape mismatch: weight {w_kt.shape} vs input {x.shape}"
    out_dtype = x.dtype

    # (in_features, N) -> (n_blocks, N, k): batch on sublanes, k on lanes.
    x3 = jnp.transpose(x.reshape(n_blocks, k, N), (0, 2, 1))
    if x3.dtype != w_kt.dtype:
        x3 = x3.astype(w_kt.dtype)  # e.g. bf16 weights -> bf16 activations, f32 acc

    # Explicit VMEM budget: per-step working set, double-buffered, + headroom,
    # capped at the v7x 64 MiB physical VMEM.
    elt = jnp.dtype(w_kt.dtype).itemsize
    step_bytes = (N * k + k * m + N * m + (m if has_bias else 0)) * elt
    vmem_limit = int(min(max(2 * step_bytes + (4 << 20), 32 << 20), 64 << 20))
    params = pltpu.CompilerParams(
        dimension_semantics=("parallel",),   # independent blocks -> megacore on v7x
        vmem_limit_bytes=vmem_limit,
    )

    out_shape = jax.ShapeDtypeStruct((n_blocks, N, m), out_dtype)
    x_spec = pl.BlockSpec((1, N, k), lambda b: (b, 0, 0))
    w_spec = pl.BlockSpec((1, k, m), lambda b: (b, 0, 0))
    o_spec = pl.BlockSpec((1, N, m), lambda b: (b, 0, 0))

    # TODO(synk): very large individual blocks (e.g. 4096x4096 f32) would need
    # an additional K/M tiling axis with a VMEM accumulator + pl.when finalize.
    if has_bias:
        assert bias is not None
        b3 = bias.reshape(n_blocks, 1, m)
        out3 = pl.pallas_call(
            _block_matmul_bias_kernel,
            out_shape=out_shape,
            grid=(n_blocks,),
            in_specs=[x_spec, w_spec, pl.BlockSpec((1, 1, m), lambda b: (b, 0, 0))],
            out_specs=o_spec,
            compiler_params=params,
        )(x3, w_kt, b3)
    else:
        out3 = pl.pallas_call(
            _block_matmul_kernel,
            out_shape=out_shape,
            grid=(n_blocks,),
            in_specs=[x_spec, w_spec],
            out_specs=o_spec,
            compiler_params=params,
        )(x3, w_kt)

    # (n_blocks, N, m) -> (out_features, N)
    return jnp.transpose(out3, (0, 2, 1)).reshape(n_blocks * m, N)


class BlockLinearPallas:
    """JAX/Pallas port of the PyTorch BlockLinear module."""

    def __init__(self,
                 block_dims: List[int | Tuple[int, int] | List[int]],
                 bias: bool = False,
                 *,
                 key: jax.Array,
                 param_dtype=jnp.float32):
        keys = jax.random.split(key, len(block_dims))
        self.blocks = []
        for kk, size in zip(keys, block_dims):
            shape = (size,) if isinstance(size, int) else tuple(size)
            # torch.randn equivalent (standard normal), deterministic via key.
            self.blocks.append(jax.random.normal(kk, shape, dtype=jnp.float32))
        # torch.block_diag treats 1-D params as (1, n) rows.
        blocks_2d = [b if b.ndim == 2 else b.reshape(1, -1) for b in self.blocks]
        self.out_features = sum(b.shape[0] for b in blocks_2d)
        self.in_features = sum(b.shape[1] for b in blocks_2d)

        self._uniform = len({b.shape for b in blocks_2d}) == 1
        if self._uniform:
            # Stacked, pre-transposed blocks: (n_blocks, k, m).  Store in
            # param_dtype (use bf16 on v6e/v7x for ~2x MXU + half HBM traffic).
            self.w_kt = jnp.stack([jnp.transpose(b) for b in blocks_2d]).astype(param_dtype)
            self.full = None
        else:
            # TODO(synk): non-uniform blocks could use PrefetchScalarGridSpec
            # row/col offsets with a max-size tile; fall back to a dense matmul.
            self.w_kt = None
            self.full = block_diag(blocks_2d).astype(param_dtype)

        # Sensible bias interpretation: one scalar per output row (the original
        # torch.zeros(sum(block_dims)) is only well-defined for int block_dims).
        self.bias = jnp.zeros((self.out_features,), jnp.float32) if bias else None

    def __call__(self, x: jax.Array) -> jax.Array:
        squeeze = x.ndim == 1
        if squeeze:
            x = x.reshape(-1, 1)
        if self._uniform:
            out = block_linear_forward(
                self.w_kt, x, self.bias, has_bias=self.bias is not None
            )
        else:
            out = jnp.dot(self.full, x,
                          preferred_element_type=jnp.float32).astype(x.dtype)
            if self.bias is not None:
                out = out + self.bias[:, None].astype(out.dtype)
        return out[:, 0] if squeeze else out


# ---------------------------------------------------------------------------
# Demo / self-check
# ---------------------------------------------------------------------------
if __name__ == "__main__":
    key = jax.random.PRNGKey(0)
    k_params, k_params2, k_x, k_bias = jax.random.split(key, 4)

    # 4 equal (128, 128) diagonal blocks -> 512x512 block-diagonal weight;
    # m = 128 keeps the output lane axis fully dense.
    block_dims = [(128, 128)] * 4
    batch = 8  # small batch sits on the sublane axis
    x = jax.random.normal(k_x, (512, batch), dtype=jnp.float32)

    # --- no-bias path (module default) ------------------------------------
    mod = BlockLinearPallas(block_dims, bias=False, key=k_params)
    out = jax.block_until_ready(mod(x))
    ref = block_diag(list(mod.blocks)) @ x
    assert out.shape == ref.shape == (512, batch)
    err = float(jnp.max(jnp.abs(out - ref)) / (jnp.max(jnp.abs(ref)) + 1e-6))
    assert err < 1e-2, f"no-bias mismatch vs reference (rel err {err})"

    # --- bias path ----------------------------------------------------------
    mod_b = BlockLinearPallas(block_dims, bias=True, key=k_params2)
    mod_b.bias = jax.random.normal(k_bias, (mod_b.out_features,), dtype=jnp.float32)
    out_b = jax.block_until_ready(mod_b(x))
    ref_b = block_diag(list(mod_b.blocks)) @ x + mod_b.bias[:, None]
    err_b = float(jnp.max(jnp.abs(out_b - ref_b)) / (jnp.max(jnp.abs(ref_b)) + 1e-6))
    assert err_b < 1e-2, f"bias mismatch vs reference (rel err {err_b})"

    print("KERNEL_OK")
</pallas_src>

<mosaic_0001>
module attributes {stable_mosaic.version = 11 : i64} {
  func.func @_block_matmul_kernel(%arg0: i32, %arg1: memref<1x8x128xf32, #tpu.memory_space<vmem>>, %arg2: memref<1x128x128xf32, #tpu.memory_space<vmem>>, %arg3: memref<1x8x128xf32, #tpu.memory_space<vmem>>) attributes {dimension_semantics = [#tpu.dimension_semantics<parallel>], iteration_bounds = array<i64: 4>, scalar_prefetch = 0 : i64, scratch_operands = 0 : i64, tpu.core_type = #tpu.core_type<tc>, window_params = [{transform_indices = @transform_0, window_bounds = array<i64: 1, 8, 128>}, {transform_indices = @transform_1, window_bounds = array<i64: 1, 128, 128>}, {transform_indices = @transform_2, window_bounds = array<i64: 1, 8, 128>}]} {
    %c0 = arith.constant 0 : index
    %c0_0 = arith.constant 0 : index
    %c0_1 = arith.constant 0 : index
    %0 = vector.load %arg1[%c0, %c0_0, %c0_1] : memref<1x8x128xf32, #tpu.memory_space<vmem>>, vector<1x8x128xf32>
    %1 = vector.shape_cast %0 : vector<1x8x128xf32> to vector<8x128xf32>
    %c0_2 = arith.constant 0 : index
    %c0_3 = arith.constant 0 : index
    %c0_4 = arith.constant 0 : index
    %2 = vector.load %arg2[%c0_2, %c0_3, %c0_4] : memref<1x128x128xf32, #tpu.memory_space<vmem>>, vector<1x128x128xf32>
    %3 = vector.shape_cast %2 : vector<1x128x128xf32> to vector<128x128xf32>
    %cst = arith.constant dense<0.000000e+00> : vector<8x128xf32>
    %4 = tpu.matmul %1, %3, %cst {dimension_numbers = #tpu.dot_dimension_numbers<[1], [0], [0], [1], [0, 0, 1, 1], [], []>} : vector<8x128xf32>, vector<128x128xf32>, vector<8x128xf32> -> vector<8x128xf32>
    %c0_5 = arith.constant 0 : index
    %c0_6 = arith.constant 0 : index
    %c0_7 = arith.constant 0 : index
    %5 = vector.load %arg3[%c0_5, %c0_6, %c0_7] : memref<1x8x128xf32, #tpu.memory_space<vmem>>, vector<1x8x128xf32>
    %6 = vector.shape_cast %5 : vector<1x8x128xf32> to vector<8x128xf32>
    %7 = vector.shape_cast %4 : vector<8x128xf32> to vector<1x8x128xf32>
    tpu.vector_store %arg3[%c0_5, %c0_6, %c0_7], %7 {strides = array<i32>} : memref<1x8x128xf32, #tpu.memory_space<vmem>>, vector<1x8x128xf32>,
    return
  }
  func.func @transform_0(%arg0: i32) -> (i32, i32, i32) {
    %c0_i32 = arith.constant 0 : i32
    %c0_i32_0 = arith.constant 0 : i32
    %c0_i32_1 = arith.constant 0 : i32
    return %arg0, %c0_i32, %c0_i32_0 : i32, i32, i32
  }
  func.func @transform_1(%arg0: i32) -> (i32, i32, i32) {
    %c0_i32 = arith.constant 0 : i32
    %c0_i32_0 = arith.constant 0 : i32
    %c0_i32_1 = arith.constant 0 : i32
    return %arg0, %c0_i32, %c0_i32_0 : i32, i32, i32
  }
  func.func @transform_2(%arg0: i32) -> (i32, i32, i32) {
    %c0_i32 = arith.constant 0 : i32
    %c0_i32_0 = arith.constant 0 : i32
    %c0_i32_1 = arith.constant 0 : i32
    return %arg0, %c0_i32, %c0_i32_0 : i32, i32, i32
  }
}

</mosaic_0001>

<llo_original>
// kernel: block_linear_forward.1
$region0: #{block_linear_forward.1}
  #allocation0 [shape = 'u32[]', space=smem, size = 0x4, offset = 0x4, fixed_abs, tag = 'smem constant byte address 0x4 - core index']
  #allocation1 [shape = 'u32[144,128]{1,0:T(1,128)}', space=vmem, size = 0x12000, scoped, tag = 'internal scratch']
  %s0 = inlined_call_operand.hbm [shape: f32[4,8,128], index: 0, kind: input, shape index: {}]
  %s1 = inlined_call_operand.hbm [shape: f32[4,128,128], index: 1, kind: input, shape index: {}]
  %s2 = inlined_call_operand.hbm [shape: f32[4,8,128], index: 2, kind: output, shape index: {}]
  %s3 = sld [smem:[#allocation0]]
  $region49: #{block_linear_forward.1} parent=0
    _
  %s5 = ssub.s32 1, %s3
  %s6 = scalar_select 0, %s5, %s3
  $region1: #{block_linear_forward.1} parent=0
    #allocation2 [shape = 'u8[8192]{0}', space=vmem, size = 0x2000, scoped, tag = 'input window, operand 0']
    #allocation3 [shape = 's32[2]{0}', space=sflag, size = 0x8, scoped, tag = 'scoped memory for block_linear_forward.1']
    #allocation4 [shape = 's32[2]{0}', space=sflag, size = 0x8, scoped, tag = 'scoped memory for block_linear_forward.1']
    #allocation5 [shape = 'u8[131072]{0}', space=vmem, size = 0x20000, scoped, tag = 'input window, operand 1']
    #allocation6 [shape = 's32[2]{0}', space=sflag, size = 0x8, scoped, tag = 'scoped memory for block_linear_forward.1']
    #allocation7 [shape = 'u8[8192]{0}', space=vmem, size = 0x2000, scoped, tag = 'output window, operand 0']
    %7 = vsyncpa [#allocation3], 0
    %s8 = scalar_lea.sflag [#allocation3], 1
    %9 = vsyncpa %s8, 0
    %10 = vsyncpa [#allocation6], 0
    %s11 = scalar_lea.sflag [#allocation6], 1
    %12 = vsyncpa %s11, 0
    %13 = vsyncpa [#allocation4], 0
    %s14 = scalar_lea.sflag [#allocation4], 1
    %15 = vsyncpa %s14, 0
    loop: start=0, step=1, limit=6
    $region2: #{block_linear_forward.1} parent=1 // loop_pre_header
      _
    $region3: #{block_linear_forward.1} parent=1 // loop_header
      %s17 = sphi 0, %s21
      %p18 = scmp.ge.s32.totalorder %s17, 6
      %s27 = sphi 0, %s29
      %s30 = sphi 0, %s27
      %s31 = sphi 0, %s30
      %s47 = sphi 0, %s31
      %s53 = sphi 0, %s55
      %s56 = sphi 0, %s53
      %s57 = sphi 0, %s56
      %s73 = sphi 0, %s57
      %s79 = sphi 0, %s81
      %s82 = sphi 0, %s79
      %s83 = sphi 0, %s82
      %s99 = sphi 0, %s83
    $region4: #{block_linear_forward.1} parent=1 // loop_header_branch
      %20 = sbr.rel (%p18) target = $region8
    $region5: #{block_linear_forward.1} parent=1 // loop_body
      %s22 = ssub.s32 %s17, 1
      %s23 = ssub.s32 %s17, 2
      %s24 = sadd.s32 %s17, 1
      %s25 = ssub.s32 %s17, %s24
      %p26 = scmp.eq.s32.totalorder %s25, 0
      %s28 = sadd.s32 %s27, 1
      %s29 = scalar_select %p26, %s27, %s28
      %p32 = pneg %p26
      %p33 = scmp.eq.s32.totalorder %s17, 3
      %p34 = por %p32, %p33
      %p35 = scmp.ne.s32.totalorder %s27, %s30
      %p36 = scmp.eq.s32.totalorder %s17, 0
      %p37 = por %p35, %p36
      %p38 = scmp.ne.s32.totalorder %s27, %s30
      %p39 = scmp.eq.s32.totalorder %s22, 3
      %p40 = por %p38, %p39
      %p41 = scmp.ne.s32.totalorder %s30, %s31
      %p42 = scmp.eq.s32.totalorder %s22, 0
      %p43 = por %p41, %p42
      %p44 = scmp.ne.s32.totalorder %s30, %s31
      %p45 = scmp.eq.s32.totalorder %s23, 3
      %p46 = por %p44, %p45
      %p48 = scmp.ne.s32.totalorder %s31, %s47
      %p49 = scmp.eq.s32.totalorder %s23, 0
      %p50 = por %p48, %p49
      %s51 = ssub.s32 %s17, %s24
      %p52 = scmp.eq.s32.totalorder %s51, 0
      %s54 = sadd.s32 %s53, 1
      %s55 = scalar_select %p52, %s53, %s54
      %p58 = pneg %p52
      %p59 = scmp.eq.s32.totalorder %s17, 3
      %p60 = por %p58, %p59
      %p61 = scmp.ne.s32.totalorder %s53, %s56
      %p62 = scmp.eq.s32.totalorder %s17, 0
      %p63 = por %p61, %p62
      %p64 = scmp.ne.s32.totalorder %s53, %s56
      %p65 = scmp.eq.s32.totalorder %s22, 3
      %p66 = por %p64, %p65
      %p67 = scmp.ne.s32.totalorder %s56, %s57
      %p68 = scmp.eq.s32.totalorder %s22, 0
      %p69 = por %p67, %p68
      %p70 = scmp.ne.s32.totalorder %s56, %s57
      %p71 = scmp.eq.s32.totalorder %s23, 3
      %p72 = por %p70, %p71
      %p74 = scmp.ne.s32.totalorder %s57, %s73
      %p75 = scmp.eq.s32.totalorder %s23, 0
      %p76 = por %p74, %p75
      %s77 = ssub.s32 %s17, %s24
      %p78 = scmp.eq.s32.totalorder %s77, 0
      %s80 = sadd.s32 %s79, 1
      %s81 = scalar_select %p78, %s79, %s80
      %p84 = pneg %p78
      %p85 = scmp.eq.s32.totalorder %s17, 3
      %p86 = por %p84, %p85
      %p87 = scmp.ne.s32.totalorder %s79, %s82
      %p88 = scmp.eq.s32.totalorder %s17, 0
      %p89 = por %p87, %p88
      %p90 = scmp.ne.s32.totalorder %s79, %s82
      %p91 = scmp.eq.s32.totalorder %s22, 3
      %p92 = por %p90, %p91
      %p93 = scmp.ne.s32.totalorder %s82, %s83
      %p94 = scmp.eq.s32.totalorder %s22, 0
      %p95 = por %p93, %p94
      %p96 = scmp.ne.s32.totalorder %s82, %s83
      %p97 = scmp.eq.s32.totalorder %s23, 3
      %p98 = por %p96, %p97
      %p100 = scmp.ne.s32.totalorder %s83, %s99
      %p101 = scmp.eq.s32.totalorder %s23, 0
      %p102 = por %p100, %p101
      %p103 = scmp.le.s32.totalorder 1, %s17
      %p104 = scmp.lt.s32.totalorder %s17, 5
      %p105 = pnand %p103, %p104
      %p106 = pneg %p105
      // Predicated region
      $region9: #{block_linear_forward.1} parent=5 // pred_check
        _
      $region10: #{block_linear_forward.1} parent=5 // pred_check_branch
        %108 = sbr.rel (%p105) target = $region12
      $region11: #{block_linear_forward.1} parent=5 // pred_region
        %s109 = ssub.s32 %s17, 1
      $region12: #{block_linear_forward.1} parent=5 // pred_fallthru
        _
      %p110 = scmp.lt.s32.totalorder %s17, 4
      // Predicated region
      $region13: #{block_linear_forward.1} parent=5 // pred_check
        %p111 = pneg %p110
      $region14: #{block_linear_forward.1} parent=5 // pred_check_branch
        %113 = sbr.rel (%p111) target = $region16
      $region15: #{block_linear_forward.1} parent=5 // pred_region
        // Predicated region
        $region17: #{block_linear_forward.1} parent=15 // pred_check
          %p114 = pneg %p37
        $region18: #{block_linear_forward.1} parent=15 // pred_check_branch
          %116 = sbr.rel (%p114) target = $region20
        $region19: #{block_linear_forward.1} parent=15 // pred_region
          %s117 = sand.u32 %s27, 1
          %s118 = scalar_lea.sflag [#allocation3], %s117
          %s119 = sand.u32 %s27, 1
          %s120 = smul.addr %s119, 8
          %s121 = scalar_lea.vmem [#allocation2], %s120
          %s123 = ssub.s32 128, 128
          %124 = vsyncadd %s118, %s123
          %s125 = smul.addr %s17, 128
          %s126 = scalar_lea.hbm %s0, %s125
          %s128 = sshll.u32 %s121, 4
          %s129 = int_to_ptr.vmem [resolvable:$true] %s128
          %131 = dma.hbm_to_vmem [thread:$0]  %s126, 128, %s129, %s118
        $region20: #{block_linear_forward.1} parent=15 // pred_fallthru
          _
        // Predicated region
        $region21: #{block_linear_forward.1} parent=15 // pred_check
          %p132 = pneg %p63
        $region22: #{block_linear_forward.1} parent=15 // pred_check_branch
          %134 = sbr.rel (%p132) target = $region24
        $region23: #{block_linear_forward.1} parent=15 // pred_region
          %s135 = sand.u32 %s53, 1
          %s136 = scalar_lea.sflag [#allocation6], %s135
          %s137 = sand.u32 %s53, 1
          %s138 = smul.addr %s137, 128
          %s139 = scalar_lea.vmem [#allocation5], %s138
          %s141 = ssub.s32 2048, 2048
          %142 = vsyncadd %s136, %s141
          %s143 = smul.addr %s17, 16
          %s144 = smul.addr %s143, 128
          %s145 = scalar_lea.hbm %s1, %s144
          %s146 = sshll.u32 %s139, 4
          %s147 = int_to_ptr.vmem [resolvable:$true] %s146
          %152 = dma.hbm_to_vmem [thread:$0]  %s145, 2048, %s147, %s136, 128, 128, 8
        $region24: #{block_linear_forward.1} parent=15 // pred_fallthru
          _
      $region16: #{block_linear_forward.1} parent=5 // pred_fallthru
        _
      %p153 = scmp.le.s32.totalorder 1, %s17
      %p154 = scmp.lt.s32.totalorder %s17, 5
      %p155 = pnand %p153, %p154
      %p156 = pneg %p155
      // Predicated region
      $region25: #{block_linear_forward.1} parent=5 // pred_check
        _
      $region26: #{block_linear_forward.1} parent=5 // pred_check_branch
        %158 = sbr.rel (%p155) target = $region28
      $region27: #{block_linear_forward.1} parent=5 // pred_region
        %s159 = ssub.s32 %s17, 1
        %s160 = sand.u32 %s30, 1
        %s161 = scalar_lea.sflag [#allocation3], %s160
        %s162 = sand.u32 %s30, 1
        %s163 = smul.addr %s162, 8
        %s164 = scalar_lea.vmem [#allocation2], %s163
        // Predicated region
        $region29: #{block_linear_forward.1} parent=27 // pred_check
          %p165 = pneg %p43
        $region30: #{block_linear_forward.1} parent=27 // pred_check_branch
          %167 = sbr.rel (%p165) target = $region32
        $region31: #{block_linear_forward.1} parent=27 // pred_region
          %168 = dma.done %s161, 128
        $region32: #{block_linear_forward.1} parent=27 // pred_fallthru
          _
        %s169 = sand.u32 %s56, 1
        %s170 = scalar_lea.sflag [#allocation6], %s169
        %s171 = sand.u32 %s56, 1
        %s172 = smul.addr %s171, 128
        %s173 = scalar_lea.vmem [#allocation5], %s172
        // Predicated region
        $region33: #{block_linear_forward.1} parent=27 // pred_check
          %p174 = pneg %p69
        $region34: #{block_linear_forward.1} parent=27 // pred_check_branch
          %176 = sbr.rel (%p174) target = $region36
        $region35: #{block_linear_forward.1} parent=27 // pred_region
          %177 = dma.done %s170, 2048
        $region36: #{block_linear_forward.1} parent=27 // pred_fallthru
          _
        %s178 = sand.u32 %s30, 1
        %s179 = scalar_lea.sflag [#allocation3], %s178
        %s180 = sand.u32 %s30, 1
        %s181 = smul.addr %s180, 8
        %s182 = scalar_lea.vmem [#allocation2], %s181
        %p183 = pneg %p43
        %p184 = pneg %p40
        %s185 = sand.u32 %s56, 1
        %s186 = scalar_lea.sflag [#allocation6], %s185
        %s187 = sand.u32 %s56, 1
        %s188 = smul.addr %s187, 128
        %s189 = scalar_lea.vmem [#allocation5], %s188
        %p190 = pneg %p69
        %p191 = pneg %p66
        %p192 = pneg %p95
        %p193 = pneg %p92
        %s194 = sand.u32 %s82, 1
        %s195 = scalar_lea.sflag [#allocation4], %s194
        %s196 = sand.u32 %s82, 1
        %s197 = smul.addr %s196, 8
        %s198 = scalar_lea.vmem [#allocation7], %s197
        %v199 = vld [vmem:[%s164] sm:$0xff]
        %v200 = vld [vmem:[%s173] sm:$0xff]
        %v201 = vld [vmem:[%s173 + $0x8] sm:$0xff]
        %v202 = vld [vmem:[%s173 + $0x10] sm:$0xff]
        %v203 = vld [vmem:[%s173 + $0x18] sm:$0xff]
        %v204 = vld [vmem:[%s173 + $0x20] sm:$0xff]
        %v205 = vld [vmem:[%s173 + $0x28] sm:$0xff]
        %v206 = vld [vmem:[%s173 + $0x30] sm:$0xff]
        %v207 = vld [vmem:[%s173 + $0x38] sm:$0xff]
        %v208 = vld [vmem:[%s173 + $0x40] sm:$0xff]
        %v209 = vld [vmem:[%s173 + $0x48] sm:$0xff]
        %v210 = vld [vmem:[%s173 + $0x50] sm:$0xff]
        %v211 = vld [vmem:[%s173 + $0x58] sm:$0xff]
        %v212 = vld [vmem:[%s173 + $0x60] sm:$0xff]
        %v213 = vld [vmem:[%s173 + $0x68] sm:$0xff]
        %v214 = vld [vmem:[%s173 + $0x70] sm:$0xff]
        %v215 = vld [vmem:[%s173 + $0x78] sm:$0xff]
        %216 = vmatprep.subr.mxu0 0.0
        %217 = vmatpush1.msra.mxu0 %v215
        %218 = vmatprep.subr.mxu0 0.0
        %219 = vmatpush1.msra.mxu0 %v214
        %220 = vmatprep.subr.mxu0 0.0
        %221 = vmatpush1.msra.mxu0 %v213
        %222 = vmatprep.subr.mxu0 0.0
        %223 = vmatpush1.msra.mxu0 %v212
        %224 = vmatprep.subr.mxu0 0.0
        %225 = vmatpush1.msra.mxu0 %v211
        %226 = vmatprep.subr.mxu0 0.0
        %227 = vmatpush1.msra.mxu0 %v210
        %228 = vmatprep.subr.mxu0 0.0
        %229 = vmatpush1.msra.mxu0 %v209
        %230 = vmatprep.subr.mxu0 0.0
        %231 = vmatpush1.msra.mxu0 %v208
        %232 = vmatprep.subr.mxu0 0.0
        %233 = vmatpush1.msra.mxu0 %v207
        %234 = vmatprep.subr.mxu0 0.0
        %235 = vmatpush1.msra.mxu0 %v206
        %236 = vmatprep.subr.mxu0 0.0
        %237 = vmatpush1.msra.mxu0 %v205
        %238 = vmatprep.subr.mxu0 0.0
        %239 = vmatpush1.msra.mxu0 %v204
        %240 = vmatprep.subr.mxu0 0.0
        %241 = vmatpush1.msra.mxu0 %v203
        %242 = vmatprep.subr.mxu0 0.0
        %243 = vmatpush1.msra.mxu0 %v202
        %244 = vmatprep.subr.mxu0 0.0
        %245 = vmatpush1.msra.mxu0 %v201
        %246 = vmatprep.subr.mxu0 0.0
        %247 = vmatpush1.msra.mxu0 %v200
        %248 = vmatprep.subr.mxu0 0.0
        %249 = vmatpush2.msra.mxu0 0.0
        %250 = vmatprep.subr.mxu0 0.0
        %251 = vmatpush2.msra.mxu0 0.0
        %252 = vmatprep.subr.mxu0 0.0
        %253 = vmatpush2.msra.mxu0 0.0
        %254 = vmatprep.subr.mxu0 0.0
        %255 = vmatpush2.msra.mxu0 0.0
        %256 = vmatprep.subr.mxu0 0.0
        %257 = vmatpush2.msra.mxu0 0.0
        %258 = vmatprep.subr.mxu0 0.0
        %259 = vmatpush2.msra.mxu0 0.0
        %260 = vmatprep.subr.mxu0 0.0
        %261 = vmatpush2.msra.mxu0 0.0
        %262 = vmatprep.subr.mxu0 0.0
        %263 = vmatpush2.msra.mxu0 0.0
        %264 = vmatprep.subr.mxu0 0.0
        %265 = vmatpush2.msra.mxu0 0.0
        %266 = vmatprep.subr.mxu0 0.0
        %267 = vmatpush2.msra.mxu0 0.0
        %268 = vmatprep.subr.mxu0 0.0
        %269 = vmatpush2.msra.mxu0 0.0
        %270 = vmatprep.subr.mxu0 0.0
        %271 = vmatpush2.msra.mxu0 0.0
        %272 = vmatprep.subr.mxu0 0.0
        %273 = vmatpush2.msra.mxu0 0.0
        %274 = vmatprep.subr.mxu0 0.0
        %275 = vmatpush2.msra.mxu0 0.0
        %276 = vmatprep.subr.mxu0 0.0
        %277 = vmatpush2.msra.mxu0 0.0
        %278 = vmatprep.subr.mxu0 0.0
        %279 = vmatpush2.msra.mxu0 0.0
        %280 = vmatprep.mubr.f32.mxu0 0.0
        %281 = vmatmul.mubr.f32.gmra.mxu0 %v199
        %v282 = vpop.f32.mrf.mxu0
        %v283 = vadd.f32 0.0, %v282
        %v284 = vpop.f32.mrf.mxu0
        %285 = vdwg.mxu0
        %286 = vst [vmem:[%s198] sm:$0xff] %v283
        %s287 = sand.u32 %s82, 1
        %s288 = scalar_lea.sflag [#allocation4], %s287
        %s289 = sand.u32 %s82, 1
        %s290 = smul.addr %s289, 8
        %s291 = scalar_lea.vmem [#allocation7], %s290
        // Predicated region
        $region37: #{block_linear_forward.1} parent=27 // pred_check
          %p292 = pneg %p92
        $region38: #{block_linear_forward.1} parent=27 // pred_check_branch
          %294 = sbr.rel (%p292) target = $region40
        $region39: #{block_linear_forward.1} parent=27 // pred_region
          %s296 = ssub.s32 128, 128
          %297 = vsyncadd %s288, %s296
          %s298 = smul.addr %s22, 128
          %s299 = scalar_lea.hbm %s2, %s298
          %s301 = sshll.u32 %s291, 4
          %s302 = int_to_ptr.vmem [resolvable:$true] %s301
          %304 = dma.vmem_to_hbm [thread:$0]  %s302, 128, %s299, %s288
        $region40: #{block_linear_forward.1} parent=27 // pred_fallthru
          _
      $region28: #{block_linear_forward.1} parent=5 // pred_fallthru
        _
      %p305 = scmp.le.s32.totalorder 2, %s17
      // Predicated region
      $region41: #{block_linear_forward.1} parent=5 // pred_check
        %p306 = pneg %p305
      $region42: #{block_linear_forward.1} parent=5 // pred_check_branch
        %308 = sbr.rel (%p306) target = $region44
      $region43: #{block_linear_forward.1} parent=5 // pred_region
        %s309 = ssub.s32 %s17, 2
        // Predicated region
        $region45: #{block_linear_forward.1} parent=43 // pred_check
          %p310 = pneg %p98
        $region46: #{block_linear_forward.1} parent=43 // pred_check_branch
          %312 = sbr.rel (%p310) target = $region48
        $region47: #{block_linear_forward.1} parent=43 // pred_region
          %s313 = sand.u32 %s83, 1
          %s314 = scalar_lea.sflag [#allocation4], %s313
          %s315 = sand.u32 %s83, 1
          %s316 = smul.addr %s315, 8
          %s317 = scalar_lea.vmem [#allocation7], %s316
          %318 = dma.done %s314, 128
        $region48: #{block_linear_forward.1} parent=43 // pred_fallthru
          _
      $region44: #{block_linear_forward.1} parent=5 // pred_fallthru
        _
    $region6: #{block_linear_forward.1} parent=1 // loop_footer
      %s21 = sadd.s32 1, %s17
    $region7: #{block_linear_forward.1} parent=1 // loop_footer_branch
      %16 = sbr.rel target = $region3
    $region8: #{block_linear_forward.1} parent=1 // loop_exit
      _
    %319 = vsyncpa [#allocation3], 1
    %s320 = scalar_lea.sflag [#allocation3], 1
    %321 = vsyncpa %s320, 1
    %322 = vsyncpa [#allocation6], 1
    %s323 = scalar_lea.sflag [#allocation6], 1
    %324 = vsyncpa %s323, 1
    %325 = vsyncpa [#allocation4], 1
    %s326 = scalar_lea.sflag [#allocation4], 1
    %327 = vsyncpa %s326, 1

</llo_original>
